<compile_context>
chip_gen: v5e
topology: v5e:2x2
jax: 0.10.0
libtpu: 0.0.40
codegen_flags: <defaults>
</compile_context>

<pallas_src>
import jax
import jax.numpy as jnp
from jax import lax
from jax.experimental import pallas as pl
from jax.experimental.pallas import tpu as pltpu

from copy import copy

_LANES = 128
_ROW_ALIGN = 32  # rows per inner chunk; multiple of the native sublane packing
                 # for f32 (8), bf16 (16) and int8/fp8 (32)


def _round_up(x, m):
    return (x + m - 1) // m * m


def _ceil_div(a, b):
    return -(-a // b)


# ----------------------------------------------------------------------------
# Fused reduction kernel:  sum((p-g)^2)  and  sum(|p-g|)  in one HBM pass.
# Grid = (shards, steps).  Axis 0 ("parallel") splits rows across TensorCores;
# axis 1 ("arbitrary") streams the row blocks.  Each shard owns one
# VMEM-resident (1, 8, 128) output block per sum, accumulated in place.
# ----------------------------------------------------------------------------
def _fused_sums_kernel(p_ref, g_ref, sq_out, abs_out):
    i = pl.program_id(1)

    @pl.when(i == 0)
    def _init():
        sq_out[...] = jnp.zeros_like(sq_out)
        abs_out[...] = jnp.zeros_like(abs_out)

    n_chunks = p_ref.shape[0] // _ROW_ALIGN  # static python int

    def body(j, carry):
        acc_sq, acc_abs = carry
        r = pl.multiple_of(j * _ROW_ALIGN, _ROW_ALIGN)
        # Chunks live in vregs: no tile-sized temporaries, no extra VMEM ld/st.
        d = (p_ref[pl.ds(r, _ROW_ALIGN), :].astype(jnp.float32)
             - g_ref[pl.ds(r, _ROW_ALIGN), :].astype(jnp.float32))
        return acc_sq + d * d, acc_abs + jnp.abs(d)

    zeros = jnp.zeros((_ROW_ALIGN, _LANES), jnp.float32)
    acc_sq, acc_abs = lax.fori_loop(
        0, n_chunks, body, (zeros, zeros),
        unroll=max(1, min(4, n_chunks)))

    # Fold the 4-vreg (32,128) carries down to one (8,128) vreg each (pure
    # in-register adds at vreg boundaries) and add into the output block.
    sq_out[0] += acc_sq.reshape(-1, 8, _LANES).sum(axis=0)
    abs_out[0] += acc_abs.reshape(-1, 8, _LANES).sum(axis=0)


def _tpu_hw():
    """Best-effort (vmem_capacity_bytes, num_tensorcores). Perf hints only."""
    vmem_cap = None
    n_cores = 1
    try:
        info = pltpu.get_tpu_info()
        vmem_cap = getattr(info, "vmem_capacity_bytes", None)
        for attr in ("num_tensorcores", "tensorcore_count", "num_cores",
                     "core_count"):
            v = getattr(info, attr, None)
            if isinstance(v, int) and v >= 1:
                n_cores = v
                break
    except Exception:
        pass
    kind = ""
    try:
        kind = jax.devices()[0].device_kind.lower()
    except Exception:
        pass
    if n_cores == 1 and "v7" in kind:
        n_cores = 2  # v7x: 2 TensorCores per chip
    if not isinstance(vmem_cap, int) or vmem_cap <= 0:
        vmem_cap = (64 << 20) if "v7" in kind else (128 << 20)
    return vmem_cap, n_cores


def _fused_mse_mae_sums(pred, gt):
    """Returns (mean((p-g)^2), mean(|p-g|)) as f32 device scalars."""
    assert pred.shape == gt.shape, (pred.shape, gt.shape)
    n = int(pred.size)  # true (unpadded) element count
    p_flat = jnp.ravel(pred)
    g_flat = jnp.ravel(gt)

    p_item = jnp.dtype(pred.dtype).itemsize
    g_item = jnp.dtype(gt.dtype).itemsize
    max_item = max(p_item, g_item)
    vmem_cap, n_cores = _tpu_hw()

    # Byte-based, generation-aware tile cap: ~4 MiB blocks on 128 MiB-VMEM
    # chips (v5e/v6e), ~2 MiB on v7x (64 MiB/TC) / unknown.  2 inputs x
    # 2 pipeline buffers stays well under the scoped VMEM limit either way.
    target_block_bytes = (4 << 20) if vmem_cap >= (100 << 20) else (2 << 20)
    cap_rows = max(_ROW_ALIGN,
                   (target_block_bytes // (_LANES * max_item))
                   // _ROW_ALIGN * _ROW_ALIGN)

    rows_raw = _ceil_div(n, _LANES)

    shards = max(1, n_cores)
    if rows_raw < shards * 4 * _ROW_ALIGN:  # too small to split across cores
        shards = 1

    rows_per_shard = _ceil_div(rows_raw, shards)
    tile_rows = min(cap_rows, _round_up(rows_per_shard, _ROW_ALIGN))
    steps = _ceil_div(rows_per_shard, tile_rows)
    # Re-balance so padding waste stays below ~one row-chunk per step.
    tile_rows = _round_up(_ceil_div(rows_per_shard, steps), _ROW_ALIGN)
    rows_padded = shards * steps * tile_rows

    # Zero padding is numerically exact (0-0 contributes 0 to both sums);
    # the true count n is applied once in inv_n below.
    pad = rows_padded * _LANES - n
    if pad:
        p_flat = jnp.pad(p_flat, (0, pad))
        g_flat = jnp.pad(g_flat, (0, pad))
    p2 = p_flat.reshape(rows_padded, _LANES)  # native dtype; upcast in-kernel
    g2 = g_flat.reshape(rows_padded, _LANES)

    in_map = lambda s, i: (s * steps + i, 0)
    out_map = lambda s, i: (s, 0, 0)

    cost = pl.CostEstimate(
        flops=5 * rows_padded * _LANES,
        transcendentals=0,
        bytes_accessed=rows_padded * _LANES * (p_item + g_item)
        + 2 * shards * 8 * _LANES * 4)

    sq_parts, abs_parts = pl.pallas_call(
        _fused_sums_kernel,
        out_shape=(
            jax.ShapeDtypeStruct((shards, 8, _LANES), jnp.float32),
            jax.ShapeDtypeStruct((shards, 8, _LANES), jnp.float32),
        ),
        grid_spec=pltpu.PrefetchScalarGridSpec(
            num_scalar_prefetch=0,
            grid=(shards, steps),
            in_specs=[
                pl.BlockSpec((tile_rows, _LANES), in_map),
                pl.BlockSpec((tile_rows, _LANES), in_map),
            ],
            out_specs=(
                pl.BlockSpec((1, 8, _LANES), out_map),
                pl.BlockSpec((1, 8, _LANES), out_map),
            ),
        ),
        compiler_params=pltpu.CompilerParams(
            dimension_semantics=("parallel", "arbitrary"),
            vmem_limit_bytes=(64 << 20) if target_block_bytes >= (4 << 20)
            else (32 << 20),
        ),
        cost_estimate=cost,
    )(p2, g2)

    inv_n = 1.0 / n  # true (unpadded) element count, applied once
    mse = jnp.sum(sq_parts) * inv_n
    mae = jnp.sum(abs_parts) * inv_n
    return mse, mae


# ----------------------------------------------------------------------------
# MultiLoss combinator (mirrors the PyTorch module semantics)
# ----------------------------------------------------------------------------
class MultiLoss:
    """loss = MyLoss1() + 0.1*MyLoss2()  -> (total_loss, details_dict)"""

    def __init__(self):
        self._alpha = 1
        self._loss2 = None

    def compute_loss(self, *args, **kwargs):
        raise NotImplementedError()

    def get_name(self):
        raise NotImplementedError()

    def __mul__(self, alpha):
        assert isinstance(alpha, (int, float))
        res = copy(self)
        res._alpha = alpha
        return res

    __rmul__ = __mul__

    def __add__(self, loss2):
        assert isinstance(loss2, MultiLoss)
        res = cur = copy(self)
        while cur._loss2 is not None:
            cur = cur._loss2
        cur._loss2 = loss2
        return res

    def __repr__(self):
        name = self.get_name()
        if self._alpha != 1:
            name = f"{self._alpha:g}*{name}"
        if self._loss2:
            name = f"{name} + {self._loss2}"
        return name

    def __call__(self, *args, **kwargs):
        return self.forward(*args, **kwargs)

    def forward(self, *args, **kwargs):
        loss = self.compute_loss(*args, **kwargs)
        if isinstance(loss, tuple):
            loss, details = loss
        elif loss.ndim == 0:
            # TODO(synk): PyTorch does float(loss) here; kept as a device
            # scalar because a host conversion would break under jax.jit.
            details = {self.get_name(): loss}
        else:
            details = {}
        loss = loss * self._alpha
        if self._loss2:
            loss2, details2 = self._loss2(*args, **kwargs)
            loss = loss + loss2
            details |= details2
        return (loss, details)


class MSELoss(MultiLoss):
    """Concrete compute_loss: mean squared error (fused Pallas reduction)."""

    def get_name(self):
        return "MSE"

    def compute_loss(self, pred, gt):
        mse, _ = _fused_mse_mae_sums(pred, gt)
        return mse


class MAELoss(MultiLoss):
    """Concrete compute_loss: mean absolute error (fused Pallas reduction)."""

    def get_name(self):
        return "MAE"

    def compute_loss(self, pred, gt):
        _, mae = _fused_mse_mae_sums(pred, gt)
        return mae


if __name__ == "__main__":
    key = jax.random.PRNGKey(0)
    k1, k2 = jax.random.split(key)

    # Small NCHW shapes: batch=2, channels=4, spatial=16x16 -> 2048 elements.
    pred = jax.random.normal(k1, (2, 4, 16, 16), dtype=jnp.float32)
    gt = jax.random.normal(k2, (2, 4, 16, 16), dtype=jnp.float32)

    # MultiLoss combination: total = 1.0*MSE + 0.1*MAE.  Under jit, the two
    # identical fused pallas_calls CSE into a single HBM pass.
    criterion = MSELoss() + 0.1 * MAELoss()

    total, details = jax.jit(lambda p, g: criterion(p, g))(pred, gt)
    total = jax.block_until_ready(total)

    # Pure-JAX reference check of the combined forward pass.
    d = pred - gt
    ref_total = jnp.mean(d * d) + 0.1 * jnp.mean(jnp.abs(d))
    assert jnp.allclose(total, ref_total, rtol=1e-5, atol=1e-5), (total, ref_total)
    assert set(details.keys()) == {"MSE", "MAE"}
    assert jnp.allclose(details["MSE"], jnp.mean(d * d), rtol=1e-5, atol=1e-5)
    assert jnp.allclose(details["MAE"], jnp.mean(jnp.abs(d)), rtol=1e-5, atol=1e-5)

    print("KERNEL_OK")
</pallas_src>

<mosaic_0001>
module attributes {stable_mosaic.version = 11 : i64} {
  func.func @_fused_sums_kernel(%arg0: i32, %arg1: i32, %arg2: memref<32x128xf32, #tpu.memory_space<vmem>>, %arg3: memref<32x128xf32, #tpu.memory_space<vmem>>, %arg4: memref<1x8x128xf32, #tpu.memory_space<vmem>>, %arg5: memref<1x8x128xf32, #tpu.memory_space<vmem>>) attributes {dimension_semantics = [#tpu.dimension_semantics<parallel>, #tpu.dimension_semantics<arbitrary>], iteration_bounds = array<i64: 1, 1>, scalar_prefetch = 0 : i64, scratch_operands = 0 : i64, tpu.core_type = #tpu.core_type<tc>, window_params = [{transform_indices = @transform_0, window_bounds = array<i64: 32, 128>}, {transform_indices = @transform_1, window_bounds = array<i64: 32, 128>}, {transform_indices = @transform_2, window_bounds = array<i64: 1, 8, 128>}, {transform_indices = @transform_3, window_bounds = array<i64: 1, 8, 128>}]} {
    %c0_i32 = arith.constant 0 : i32
    %0 = arith.cmpi eq, %arg1, %c0_i32 : i32
    %1 = arith.extui %0 : i1 to i32
    %c0_i32_0 = arith.constant 0 : i32
    %2 = arith.cmpi ne, %1, %c0_i32_0 : i32
    scf.if %2 {
      %cst_17 = arith.constant 0.000000e+00 : f32
      %31 = vector.broadcast %cst_17 : f32 to vector<1x8x128xf32>
      %c0_18 = arith.constant 0 : index
      %c0_19 = arith.constant 0 : index
      %c0_20 = arith.constant 0 : index
      %32 = vector.load %arg4[%c0_18, %c0_19, %c0_20] : memref<1x8x128xf32, #tpu.memory_space<vmem>>, vector<1x8x128xf32>
      tpu.vector_store %arg4[%c0_18, %c0_19, %c0_20], %31 {strides = array<i32>} : memref<1x8x128xf32, #tpu.memory_space<vmem>>, vector<1x8x128xf32>,
      %cst_21 = arith.constant 0.000000e+00 : f32
      %33 = vector.broadcast %cst_21 : f32 to vector<1x8x128xf32>
      %c0_22 = arith.constant 0 : index
      %c0_23 = arith.constant 0 : index
      %c0_24 = arith.constant 0 : index
      %34 = vector.load %arg5[%c0_22, %c0_23, %c0_24] : memref<1x8x128xf32, #tpu.memory_space<vmem>>, vector<1x8x128xf32>
      tpu.vector_store %arg5[%c0_22, %c0_23, %c0_24], %33 {strides = array<i32>} : memref<1x8x128xf32, #tpu.memory_space<vmem>>, vector<1x8x128xf32>,
    } else {
    }
    %cst = arith.constant 0.000000e+00 : f32
    %3 = vector.broadcast %cst : f32 to vector<32x128xf32>
    %c0_i32_1 = arith.constant 0 : i32
    %c32_i32 = arith.constant 32 : i32
    %4 = arith.muli %c0_i32_1, %c32_i32 : i32
    %5 = tpu.assume_multiple %4, 32 : i32
    %6 = arith.index_cast %5 : i32 to index
    %c0 = arith.constant 0 : index
    %7 = vector.load %arg2[%6, %c0] : memref<32x128xf32, #tpu.memory_space<vmem>>, vector<32x128xf32>
    %8 = arith.index_cast %5 : i32 to index
    %c0_2 = arith.constant 0 : index
    %9 = vector.load %arg3[%8, %c0_2] : memref<32x128xf32, #tpu.memory_space<vmem>>, vector<32x128xf32>
    %10 = arith.subf %7, %9 : vector<32x128xf32>
    %11 = arith.mulf %10, %10 : vector<32x128xf32>
    %12 = arith.addf %3, %11 : vector<32x128xf32>
    %13 = math.absf %10 : vector<32x128xf32>
    %14 = arith.addf %3, %13 : vector<32x128xf32>
    %c1_i32 = arith.constant 1 : i32
    %c0_3 = arith.constant 0 : index
    %c0_4 = arith.constant 0 : index
    %c0_5 = arith.constant 0 : index
    %15 = vector.load %arg4[%c0_3, %c0_4, %c0_5] : memref<1x8x128xf32, #tpu.memory_space<vmem>>, vector<1x8x128xf32>
    %16 = vector.shape_cast %15 : vector<1x8x128xf32> to vector<8x128xf32>
    %17 = vector.shape_cast %12 : vector<32x128xf32> to vector<4x8x128xf32>
    %cst_6 = arith.constant dense<0.000000e+00> : vector<8x128xf32>
    %18 = vector.multi_reduction <add>, %17, %cst_6 [0] : vector<4x8x128xf32> to vector<8x128xf32>
    %19 = arith.addf %16, %18 : vector<8x128xf32>
    %c0_7 = arith.constant 0 : index
    %c0_8 = arith.constant 0 : index
    %c0_9 = arith.constant 0 : index
    %20 = vector.load %arg4[%c0_7, %c0_8, %c0_9] : memref<1x8x128xf32, #tpu.memory_space<vmem>>, vector<1x8x128xf32>
    %21 = vector.shape_cast %20 : vector<1x8x128xf32> to vector<8x128xf32>
    %22 = vector.shape_cast %19 : vector<8x128xf32> to vector<1x8x128xf32>
    tpu.vector_store %arg4[%c0_7, %c0_8, %c0_9], %22 {strides = array<i32>} : memref<1x8x128xf32, #tpu.memory_space<vmem>>, vector<1x8x128xf32>,
    %c0_10 = arith.constant 0 : index
    %c0_11 = arith.constant 0 : index
    %c0_12 = arith.constant 0 : index
    %23 = vector.load %arg5[%c0_10, %c0_11, %c0_12] : memref<1x8x128xf32, #tpu.memory_space<vmem>>, vector<1x8x128xf32>
    %24 = vector.shape_cast %23 : vector<1x8x128xf32> to vector<8x128xf32>
    %25 = vector.shape_cast %14 : vector<32x128xf32> to vector<4x8x128xf32>
    %cst_13 = arith.constant dense<0.000000e+00> : vector<8x128xf32>
    %26 = vector.multi_reduction <add>, %25, %cst_13 [0] : vector<4x8x128xf32> to vector<8x128xf32>
    %27 = arith.addf %24, %26 : vector<8x128xf32>
    %c0_14 = arith.constant 0 : index
    %c0_15 = arith.constant 0 : index
    %c0_16 = arith.constant 0 : index
    %28 = vector.load %arg5[%c0_14, %c0_15, %c0_16] : memref<1x8x128xf32, #tpu.memory_space<vmem>>, vector<1x8x128xf32>
    %29 = vector.shape_cast %28 : vector<1x8x128xf32> to vector<8x128xf32>
    %30 = vector.shape_cast %27 : vector<8x128xf32> to vector<1x8x128xf32>
    tpu.vector_store %arg5[%c0_14, %c0_15, %c0_16], %30 {strides = array<i32>} : memref<1x8x128xf32, #tpu.memory_space<vmem>>, vector<1x8x128xf32>,
    return
  }
  func.func @transform_0(%arg0: i32, %arg1: i32) -> (i32, i32) {
    %c1_i32 = arith.constant 1 : i32
    %0 = arith.muli %arg0, %c1_i32 : i32
    %1 = arith.addi %0, %arg1 : i32
    %c0_i32 = arith.constant 0 : i32
    %c0_i32_0 = arith.constant 0 : i32
    return %1, %c0_i32 : i32, i32
  }
  func.func @transform_1(%arg0: i32, %arg1: i32) -> (i32, i32) {
    %c1_i32 = arith.constant 1 : i32
    %0 = arith.muli %arg0, %c1_i32 : i32
    %1 = arith.addi %0, %arg1 : i32
    %c0_i32 = arith.constant 0 : i32
    %c0_i32_0 = arith.constant 0 : i32
    return %1, %c0_i32 : i32, i32
  }
  func.func @transform_2(%arg0: i32, %arg1: i32) -> (i32, i32, i32) {
    %c0_i32 = arith.constant 0 : i32
    %c0_i32_0 = arith.constant 0 : i32
    %c0_i32_1 = arith.constant 0 : i32
    return %arg0, %c0_i32, %c0_i32_0 : i32, i32, i32
  }
  func.func @transform_3(%arg0: i32, %arg1: i32) -> (i32, i32, i32) {
    %c0_i32 = arith.constant 0 : i32
    %c0_i32_0 = arith.constant 0 : i32
    %c0_i32_1 = arith.constant 0 : i32
    return %arg0, %c0_i32, %c0_i32_0 : i32, i32, i32
  }
}

</mosaic_0001>

<llo_original>
// kernel: _lambda_.2
$region0: #{_lambda_.2}
  #allocation0 [shape = 'u32[]', space=smem, size = 0x4, offset = 0x4, fixed_abs, tag = 'smem constant byte address 0x4 - core index']
  #allocation1 [shape = 'u32[72,128]{1,0:T(1,128)}', space=vmem, size = 0x9000, scoped, tag = 'internal scratch']
  %s0 = inlined_call_operand.vmem [shape: f32[32,128], index: 0, kind: input, shape index: {}]
  %s1 = inlined_call_operand.vmem [shape: f32[32,128], index: 1, kind: input, shape index: {}]
  %s2 = inlined_call_operand.vmem [shape: f32[1,8,128], index: 2, kind: output, shape index: {0}]
  %s3 = inlined_call_operand.vmem [shape: f32[1,8,128], index: 3, kind: output, shape index: {1}]
  %4 = xla_tuple %s2, %s3
  %s5 = sld [smem:[#allocation0]]
  $region30: #{_lambda_.2} parent=0
    _
  %s7 = ssub.s32 1, %s5
  %s8 = scalar_select 0, %s7, %s5
  // Predicated region
  $region2: #{_lambda_.2} parent=0 // pred_check
    _
  $region3: #{_lambda_.2} parent=0 // pred_check_branch
    %10 = sbr.rel (0) target = $region5
  $region4: #{_lambda_.2} parent=0 // pred_region
    %s11 = sadd.s32 0, 0
    %s12 = smul.u32 4, %s11
    %p13 = scmp.lt.s32.totalorder %s12, 3
    %s14 = scalar_select %p13, %s12, 3
    %s15 = smul.addr %s14, 8
    %s16 = scalar_lea.vmem %s0, %s15
    %s17 = sadd.s32 0, 0
    %s18 = smul.u32 4, %s17
  $region5: #{_lambda_.2} parent=0 // pred_fallthru
    _
  // Predicated region
  $region6: #{_lambda_.2} parent=0 // pred_check
    _
  $region7: #{_lambda_.2} parent=0 // pred_check_branch
    %20 = sbr.rel (0) target = $region9
  $region8: #{_lambda_.2} parent=0 // pred_region
    %s21 = sadd.s32 0, 0
    %s22 = smul.u32 4, %s21
    %p23 = scmp.lt.s32.totalorder %s22, 3
    %s24 = scalar_select %p23, %s22, 3
    %s25 = smul.addr %s24, 8
    %s26 = scalar_lea.vmem %s1, %s25
    %s27 = sadd.s32 0, 0
    %s28 = smul.u32 4, %s27
  $region9: #{_lambda_.2} parent=0 // pred_fallthru
    _
  %s29 = sadd.s32 0, 0
  %s30 = smul.u32 4, %s29
  %p31 = scmp.lt.s32.totalorder %s30, 3
  %s32 = scalar_select %p31, %s30, 3
  %s33 = smul.addr %s32, 8
  %s34 = scalar_lea.vmem %s0, %s33
  %s35 = sadd.s32 0, 0
  %s36 = smul.u32 4, %s35
  %p37 = scmp.lt.s32.totalorder %s36, 3
  %s38 = scalar_select %p37, %s36, 3
  %s39 = smul.addr %s38, 8
  %s40 = scalar_lea.vmem %s1, %s39
  %s41 = sadd.s32 0, 0
  %s42 = smul.u32 4, %s41
  %p43 = scmp.lt.s32.totalorder %s42, 3
  %s44 = scalar_select %p43, %s42, 3
  %s45 = smul.addr %s44, 8
  %s46 = scalar_lea.vmem %s0, %s45
  %s47 = sadd.s32 0, 0
  %s48 = smul.u32 4, %s47
  %s49 = sadd.s32 0, 0
  %s50 = smul.u32 4, %s49
  %p51 = scmp.lt.s32.totalorder %s50, 3
  %s52 = scalar_select %p51, %s50, 3
  %s53 = smul.addr %s52, 8
  %s54 = scalar_lea.vmem %s1, %s53
  %s55 = sadd.s32 0, 0
  %s56 = smul.u32 4, %s55
  %p57 = scmp.eq.s32.totalorder 0, 0
  // Predicated region
  $region10: #{_lambda_.2} parent=0 // pred_check
    %p58 = pneg %p57
  $region11: #{_lambda_.2} parent=0 // pred_check_branch
    %60 = sbr.rel (%p58) target = $region13
  $region12: #{_lambda_.2} parent=0 // pred_region
    %61 = vst [vmem:[%s2] sm:$0xff] 0.0
    %62 = vst [vmem:[%s3] sm:$0xff] 0.0
  $region13: #{_lambda_.2} parent=0 // pred_fallthru
    _
  %v63 = vld [vmem:[%s46] sm:$0xff]
  %v64 = vld [vmem:[%s46 + $0x8] sm:$0xff]
  %v65 = vld [vmem:[%s46 + $0x10] sm:$0xff]
  %v66 = vld [vmem:[%s46 + $0x18] sm:$0xff]
  %v67 = vld [vmem:[%s54] sm:$0xff]
  %v68 = vld [vmem:[%s54 + $0x8] sm:$0xff]
  %v69 = vld [vmem:[%s54 + $0x10] sm:$0xff]
  %v70 = vld [vmem:[%s54 + $0x18] sm:$0xff]
  %v71 = vsub.f32 %v63, %v67
  %v72 = vsub.f32 %v64, %v68
  %v73 = vsub.f32 %v65, %v69
  %v74 = vsub.f32 %v66, %v70
  %v75 = vmul.f32 %v71, %v71
  %v76 = vmul.f32 %v72, %v72
  %v77 = vmul.f32 %v73, %v73
  %v78 = vmul.f32 %v74, %v74
  %v79 = vadd.f32 %v75, 0.0
  %v80 = vadd.f32 %v76, 0.0
  %v81 = vadd.f32 %v77, 0.0
  %v82 = vadd.f32 %v78, 0.0
  %v83 = vand.u32 2147483647, %v71
  %v84 = vand.u32 2147483647, %v72
  %v85 = vand.u32 2147483647, %v73
  %v86 = vand.u32 2147483647, %v74
  %v87 = vadd.f32 %v83, 0.0
  %v88 = vadd.f32 %v84, 0.0
  %v89 = vadd.f32 %v85, 0.0
  %v90 = vadd.f32 %v86, 0.0
  %v91 = vld [vmem:[%s2] sm:$0xff]
  %v92 = vadd.f32 %v79, %v80
  %v93 = vadd.f32 %v92, %v81
  %v94 = vadd.f32 %v93, %v82
  %v95 = vadd.f32 %v91, %v94
  %96 = vst [vmem:[%s2] sm:$0xff] %v95
  %v97 = vld [vmem:[%s3] sm:$0xff]
  %v98 = vadd.f32 %v87, %v88
  %v99 = vadd.f32 %v98, %v89
  %v100 = vadd.f32 %v99, %v90
  %v101 = vadd.f32 %v97, %v100
  %102 = vst [vmem:[%s3] sm:$0xff] %v101
  // Predicated region
  $region14: #{_lambda_.2} parent=0 // pred_check
    _
  $region15: #{_lambda_.2} parent=0 // pred_check_branch
    %104 = sbr.rel (0) target = $region17
  $region16: #{_lambda_.2} parent=0 // pred_region
    _
  $region17: #{_lambda_.2} parent=0 // pred_fallthru
    _
  // Predicated region
  $region18: #{_lambda_.2} parent=0 // pred_check
    _
  $region19: #{_lambda_.2} parent=0 // pred_check_branch
    %106 = sbr.rel (0) target = $region21
  $region20: #{_lambda_.2} parent=0 // pred_region
    _
  $region21: #{_lambda_.2} parent=0 // pred_fallthru
    _
  // Predicated region
  $region22: #{_lambda_.2} parent=0 // pred_check
    _
  $region23: #{_lambda_.2} parent=0 // pred_check_branch
    %108 = sbr.rel (0) target = $region25
  $region24: #{_lambda_.2} parent=0 // pred_region
    _
  $region25: #{_lambda_.2} parent=0 // pred_fallthru
    _
  // Predicated region
  $region26: #{_lambda_.2} parent=0 // pred_check
    _
  $region27: #{_lambda_.2} parent=0 // pred_check_branch
    %110 = sbr.rel (0) target = $region29
  $region28: #{_lambda_.2} parent=0 // pred_region
    _
  $region29: #{_lambda_.2} parent=0 // pred_fallthru
    _

</llo_original>
